<compile_context>
chip_gen: v5e
topology: v5e:2x2
jax: 0.10.0
libtpu: 0.0.40
codegen_flags: <defaults>
</compile_context>

<pallas_src>
import jax
import jax.numpy as jnp
from jax.experimental import pallas as pl
from jax.experimental.pallas import tpu as pltpu


OBS_DIM = 4   # CartPole-v1 observation dim
ACT_DIM = 2   # CartPole-v1 action dim
HIDDEN = 64


def _round_up(x, m):
    return ((x + m - 1) // m) * m


def actor_critic_kernel(obs_ref, w1_ref, w2_ref, b2_ref, wh_ref, bh_ref, out_ref):
    """One batch tile, feature-major: x is [k_pad, tb] with the batch on lanes.

    h1  = tanh(W1p @ x)        (b1 folded into W1p via the constant-1 obs row)
    h2  = tanh(W2 @ h1 + b2)
    out = Whp @ h2 + bhp       (actor + critic heads fused, rows padded to 8)
    """
    cdt = w1_ref.dtype                      # MXU operand dtype (f32 or bf16)
    x = obs_ref[...].astype(cdt)            # in-kernel cast: free VPU slack

    h1 = jnp.dot(w1_ref[...], x, preferred_element_type=jnp.float32)    # [H, tb]
    h1 = jnp.tanh(h1)                                                    # f32

    h2 = jnp.dot(w2_ref[...], h1.astype(cdt),
                 preferred_element_type=jnp.float32)                     # [H, tb]
    h2 = jnp.tanh(h2 + b2_ref[...])                                      # f32

    head = jnp.dot(wh_ref[...], h2.astype(cdt),
                   preferred_element_type=jnp.float32)                   # [8, tb]
    out_ref[...] = (head + bh_ref[...]).astype(out_ref.dtype)            # dense store


def prepare_params(params, compute_dtype=jnp.bfloat16):
    """Once-per-update parameter prep (hoisted out of the forward call).

    * Keeps nn.Linear weights in their native [out, in] layout (feature-major
      compute needs no transposes).
    * Pads W1's K dim to a sublane multiple and folds b1 into the pad column
      (the wrapper feeds a constant 1.0 in the matching obs row).
    * Fuses actor + critic heads and pads head rows to 8 so the output store
      is sublane- and lane-dense.
    * Casts MXU operands to `compute_dtype`; biases stay f32.
    """
    obs_dim = params["w1"].shape[1]
    act_dim = params["wa"].shape[0]
    hidden = params["w1"].shape[0]
    n_out = act_dim + 1
    k_pad = _round_up(obs_dim + 1, 8)        # +1 column holds the folded b1
    n_pad = _round_up(n_out, 8)

    w1 = jnp.zeros((hidden, k_pad), jnp.float32)
    w1 = w1.at[:, :obs_dim].set(params["w1"])
    w1 = w1.at[:, obs_dim].set(params["b1"])                 # folded bias column

    wh = jnp.zeros((n_pad, hidden), jnp.float32)
    wh = wh.at[:act_dim].set(params["wa"])
    wh = wh.at[act_dim:n_out].set(params["wc"])
    bh = jnp.zeros((n_pad, 1), jnp.float32)
    bh = bh.at[:act_dim, 0].set(params["ba"])
    bh = bh.at[act_dim:n_out, 0].set(params["bc"])

    return dict(
        w1=w1.astype(compute_dtype),
        w2=params["w2"].astype(compute_dtype),
        b2=params["b2"].reshape(hidden, 1).astype(jnp.float32),
        wh=wh.astype(compute_dtype),
        bh=bh,
        obs_dim=obs_dim, k_pad=k_pad,
        act_dim=act_dim, n_out=n_out, n_pad=n_pad, hidden=hidden,
    )


def _pick_tb(B, tb_max=4096):
    """Full batch when small; otherwise a lane-aligned tile giving >= 2 grid
    steps (keeps both v7x TensorCores busy), capped at tb_max rows."""
    if B <= 256:
        return B
    tb = _round_up(pl.cdiv(B, 2), 128)
    return max(128, min(tb, tb_max))


def actor_critic_forward(obs, kp, *, tb=None):
    """obs: [B, obs_dim] f32.  kp: output of prepare_params().
    Returns (logits [B, act_dim], value [B, 1]) in f32."""
    B = obs.shape[0]
    obs_dim, k_pad = kp["obs_dim"], kp["k_pad"]
    act_dim, n_out, n_pad = kp["act_dim"], kp["n_out"], kp["n_pad"]
    hidden = kp["hidden"]

    # Feature-major input: [k_pad, B] f32 with a constant-1.0 row at index
    # obs_dim so the first matmul applies the folded b1.  One tiny fused XLA
    # pass; the compute-dtype cast happens inside the kernel.
    obs_aug = jnp.concatenate([obs, jnp.ones((B, 1), obs.dtype)], axis=1)
    if k_pad > obs_dim + 1:
        obs_aug = jnp.pad(obs_aug, ((0, 0), (0, k_pad - obs_dim - 1)))
    obs_t = obs_aug.T                                        # [k_pad, B] f32

    # Batch tile: either the full batch (single block) or a multiple of 128
    # so the lane dimension of every block is aligned.
    if tb is None:
        tb = _pick_tb(B)
    if tb >= B:
        tb = B
    else:
        tb = max(128, (tb // 128) * 128)
    grid = (pl.cdiv(B, tb),)

    def resident(x):
        nd = x.ndim
        return pl.BlockSpec(x.shape, lambda i: (0,) * nd)    # same block every step

    weights = (kp["w1"], kp["w2"], kp["b2"], kp["wh"], kp["bh"])

    cost = pl.CostEstimate(
        flops=2 * B * (k_pad * hidden + hidden * hidden + hidden * n_pad),
        transcendentals=2 * B * hidden,
        bytes_accessed=int(obs_t.size) * obs_t.dtype.itemsize
        + B * n_pad * 4
        + sum(int(w.size) * w.dtype.itemsize for w in weights),
    )

    out = pl.pallas_call(
        actor_critic_kernel,
        out_shape=jax.ShapeDtypeStruct((n_pad, B), jnp.float32),
        grid=grid,
        in_specs=[pl.BlockSpec((k_pad, tb), lambda i: (0, i))]   # obs: batch on lanes
        + [resident(w) for w in weights],                        # weights VMEM-resident
        out_specs=pl.BlockSpec((n_pad, tb), lambda i: (0, i)),   # lane-dense store
        compiler_params=pltpu.CompilerParams(
            dimension_semantics=("parallel",)),                  # megacore on v7x
        cost_estimate=cost,
    )(obs_t, *weights)

    logits = out[:act_dim].T                                     # [B, act_dim]
    value = out[act_dim:n_out].T                                 # [B, 1]
    return logits, value


def init_params(key):
    """Deterministic synthetic init matching nn.Linear shapes (PyTorch convention)."""
    ks = jax.random.split(key, 8)

    def lin(kw, kb, fan_in, fan_out):
        bound = 1.0 / jnp.sqrt(fan_in)
        w = jax.random.uniform(kw, (fan_out, fan_in), jnp.float32, -bound, bound)
        b = jax.random.uniform(kb, (fan_out,), jnp.float32, -bound, bound)
        return w, b

    w1, b1 = lin(ks[0], ks[1], OBS_DIM, HIDDEN)
    w2, b2 = lin(ks[2], ks[3], HIDDEN, HIDDEN)
    wa, ba = lin(ks[4], ks[5], HIDDEN, ACT_DIM)
    wc, bc = lin(ks[6], ks[7], HIDDEN, 1)
    return dict(w1=w1, b1=b1, w2=w2, b2=b2, wa=wa, ba=ba, wc=wc, bc=bc)


def reference_forward(obs, p):
    h = jnp.tanh(obs @ p["w1"].T + p["b1"])
    h = jnp.tanh(h @ p["w2"].T + p["b2"])
    return h @ p["wa"].T + p["ba"], h @ p["wc"].T + p["bc"]


if __name__ == "__main__":
    key = jax.random.PRNGKey(0)
    kparam, kx = jax.random.split(key)
    params = init_params(kparam)

    B = 8  # small batch of CartPole observations
    obs = jax.random.normal(kx, (B, OBS_DIM), jnp.float32)
    ref_logits, ref_value = reference_forward(obs, params)

    # 1) Exact-semantics check: f32 operands in the kernel, single block.
    kp32 = prepare_params(params, jnp.float32)
    logits, value = actor_critic_forward(obs, kp32)
    jax.block_until_ready((logits, value))
    assert logits.shape == (B, ACT_DIM) and value.shape == (B, 1)
    assert jnp.allclose(logits, ref_logits, atol=1e-4, rtol=1e-4)
    assert jnp.allclose(value, ref_value, atol=1e-4, rtol=1e-4)

    # 2) Fast-path check: bf16 MXU operands, f32 accumulation + f32 elementwise.
    #    (obs is quantized to bf16 inside the kernel -> ~2-3 digits of drift vs
    #     the f32 reference; fine for PPO rollouts, documented here.)
    kpbf = prepare_params(params, jnp.bfloat16)
    logits_bf, value_bf = actor_critic_forward(obs, kpbf)
    jax.block_until_ready((logits_bf, value_bf))
    assert jnp.allclose(logits_bf, ref_logits, atol=1e-1, rtol=5e-2)
    assert jnp.allclose(value_bf, ref_value, atol=1e-1, rtol=5e-2)

    # 3) Multi-block grid path (partial last tile, lane-aligned tb).
    B2 = 640
    obs2 = jax.random.normal(kx, (B2, OBS_DIM), jnp.float32)
    l2, v2 = actor_critic_forward(obs2, kpbf, tb=256)
    jax.block_until_ready((l2, v2))
    rl2, rv2 = reference_forward(obs2, params)
    assert l2.shape == (B2, ACT_DIM) and v2.shape == (B2, 1)
    assert jnp.allclose(l2, rl2, atol=1e-1, rtol=5e-2)
    assert jnp.allclose(v2, rv2, atol=1e-1, rtol=5e-2)

    # 4) Default tile selection path (>= 2 grid steps for megacore sharding).
    B3 = 1000
    obs3 = jax.random.normal(kx, (B3, OBS_DIM), jnp.float32)
    l3, v3 = actor_critic_forward(obs3, kpbf)
    jax.block_until_ready((l3, v3))
    rl3, rv3 = reference_forward(obs3, params)
    assert jnp.allclose(l3, rl3, atol=1e-1, rtol=5e-2)
    assert jnp.allclose(v3, rv3, atol=1e-1, rtol=5e-2)

    # TODO(synk): the stochastic `act()` (Categorical sampling) is policy glue,
    # not a tensor hot path; it is intentionally left outside the kernel.
    print("KERNEL_OK")
</pallas_src>

<mosaic_0001>
module attributes {stable_mosaic.version = 11 : i64} {
  func.func @actor_critic_kernel(%arg0: i32, %arg1: memref<8x8xf32, #tpu.memory_space<vmem>>, %arg2: memref<64x8xf32, #tpu.memory_space<vmem>>, %arg3: memref<64x64xf32, #tpu.memory_space<vmem>>, %arg4: memref<64x1xf32, #tpu.memory_space<vmem>>, %arg5: memref<8x64xf32, #tpu.memory_space<vmem>>, %arg6: memref<8x1xf32, #tpu.memory_space<vmem>>, %arg7: memref<8x8xf32, #tpu.memory_space<vmem>>) attributes {dimension_semantics = [#tpu.dimension_semantics<parallel>], iteration_bounds = array<i64: 1>, scalar_prefetch = 0 : i64, scratch_operands = 0 : i64, tpu.core_type = #tpu.core_type<tc>, window_params = [{transform_indices = @transform_0, window_bounds = array<i64: 8, 8>}, {pipeline_mode = #tpu.pipeline_mode<synchronous>, transform_indices = @transform_1, window_bounds = array<i64: 64, 8>}, {pipeline_mode = #tpu.pipeline_mode<synchronous>, transform_indices = @transform_2, window_bounds = array<i64: 64, 64>}, {pipeline_mode = #tpu.pipeline_mode<synchronous>, transform_indices = @transform_3, window_bounds = array<i64: 64, 1>}, {pipeline_mode = #tpu.pipeline_mode<synchronous>, transform_indices = @transform_4, window_bounds = array<i64: 8, 64>}, {pipeline_mode = #tpu.pipeline_mode<synchronous>, transform_indices = @transform_5, window_bounds = array<i64: 8, 1>}, {transform_indices = @transform_6, window_bounds = array<i64: 8, 8>}]} {
    %c0 = arith.constant 0 : index
    %c0_0 = arith.constant 0 : index
    %0 = vector.load %arg1[%c0, %c0_0] : memref<8x8xf32, #tpu.memory_space<vmem>>, vector<8x8xf32>
    %c0_1 = arith.constant 0 : index
    %c0_2 = arith.constant 0 : index
    %1 = vector.load %arg2[%c0_1, %c0_2] : memref<64x8xf32, #tpu.memory_space<vmem>>, vector<64x8xf32>
    %cst = arith.constant dense<0.000000e+00> : vector<64x8xf32>
    %2 = tpu.matmul %1, %0, %cst {dimension_numbers = #tpu.dot_dimension_numbers<[1], [0], [0], [1], [0, 0, 1, 1], [], []>} : vector<64x8xf32>, vector<8x8xf32>, vector<64x8xf32> -> vector<64x8xf32>
    %3 = math.tanh %2 : vector<64x8xf32>
    %c0_3 = arith.constant 0 : index
    %c0_4 = arith.constant 0 : index
    %4 = vector.load %arg3[%c0_3, %c0_4] : memref<64x64xf32, #tpu.memory_space<vmem>>, vector<64x64xf32>
    %cst_5 = arith.constant dense<0.000000e+00> : vector<64x8xf32>
    %5 = tpu.matmul %4, %3, %cst_5 {dimension_numbers = #tpu.dot_dimension_numbers<[1], [0], [0], [1], [0, 0, 1, 1], [], []>} : vector<64x64xf32>, vector<64x8xf32>, vector<64x8xf32> -> vector<64x8xf32>
    %c0_6 = arith.constant 0 : index
    %c0_7 = arith.constant 0 : index
    %6 = vector.load %arg4[%c0_6, %c0_7] : memref<64x1xf32, #tpu.memory_space<vmem>>, vector<64x1xf32>
    %7 = vector.broadcast %6 : vector<64x1xf32> to vector<64x8xf32>
    %8 = arith.addf %5, %7 : vector<64x8xf32>
    %9 = math.tanh %8 : vector<64x8xf32>
    %c0_8 = arith.constant 0 : index
    %c0_9 = arith.constant 0 : index
    %10 = vector.load %arg5[%c0_8, %c0_9] : memref<8x64xf32, #tpu.memory_space<vmem>>, vector<8x64xf32>
    %cst_10 = arith.constant dense<0.000000e+00> : vector<8x8xf32>
    %11 = tpu.matmul %10, %9, %cst_10 {dimension_numbers = #tpu.dot_dimension_numbers<[1], [0], [0], [1], [0, 0, 1, 1], [], []>} : vector<8x64xf32>, vector<64x8xf32>, vector<8x8xf32> -> vector<8x8xf32>
    %c0_11 = arith.constant 0 : index
    %c0_12 = arith.constant 0 : index
    %12 = vector.load %arg6[%c0_11, %c0_12] : memref<8x1xf32, #tpu.memory_space<vmem>>, vector<8x1xf32>
    %13 = vector.broadcast %12 : vector<8x1xf32> to vector<8x8xf32>
    %14 = arith.addf %11, %13 : vector<8x8xf32>
    %c0_13 = arith.constant 0 : index
    %c0_14 = arith.constant 0 : index
    %15 = vector.load %arg7[%c0_13, %c0_14] : memref<8x8xf32, #tpu.memory_space<vmem>>, vector<8x8xf32>
    tpu.vector_store %arg7[%c0_13, %c0_14], %14 {strides = array<i32>} : memref<8x8xf32, #tpu.memory_space<vmem>>, vector<8x8xf32>,
    return
  }
  func.func @transform_0(%arg0: i32) -> (i32, i32) {
    %c0_i32 = arith.constant 0 : i32
    %c0_i32_0 = arith.constant 0 : i32
    return %c0_i32, %arg0 : i32, i32
  }
  func.func @transform_1(%arg0: i32) -> (i32, i32) {
    %c0_i32 = arith.constant 0 : i32
    %c0_i32_0 = arith.constant 0 : i32
    %c0_i32_1 = arith.constant 0 : i32
    return %c0_i32, %c0_i32_0 : i32, i32
  }
  func.func @transform_2(%arg0: i32) -> (i32, i32) {
    %c0_i32 = arith.constant 0 : i32
    %c0_i32_0 = arith.constant 0 : i32
    %c0_i32_1 = arith.constant 0 : i32
    return %c0_i32, %c0_i32_0 : i32, i32
  }
  func.func @transform_3(%arg0: i32) -> (i32, i32) {
    %c0_i32 = arith.constant 0 : i32
    %c0_i32_0 = arith.constant 0 : i32
    %c0_i32_1 = arith.constant 0 : i32
    return %c0_i32, %c0_i32_0 : i32, i32
  }
  func.func @transform_4(%arg0: i32) -> (i32, i32) {
    %c0_i32 = arith.constant 0 : i32
    %c0_i32_0 = arith.constant 0 : i32
    %c0_i32_1 = arith.constant 0 : i32
    return %c0_i32, %c0_i32_0 : i32, i32
  }
  func.func @transform_5(%arg0: i32) -> (i32, i32) {
    %c0_i32 = arith.constant 0 : i32
    %c0_i32_0 = arith.constant 0 : i32
    %c0_i32_1 = arith.constant 0 : i32
    return %c0_i32, %c0_i32_0 : i32, i32
  }
  func.func @transform_6(%arg0: i32) -> (i32, i32) {
    %c0_i32 = arith.constant 0 : i32
    %c0_i32_0 = arith.constant 0 : i32
    return %c0_i32, %arg0 : i32, i32
  }
}

</mosaic_0001>

<llo_original>
// kernel: tpu_custom_call.1
$region0: #{tpu_custom_call.1}
  #allocation0 [shape = 'u32[]', space=smem, size = 0x4, offset = 0x4, fixed_abs, tag = 'smem constant byte address 0x4 - core index']
  #allocation1 [shape = 'u32[72,128]{1,0:T(1,128)}', space=vmem, size = 0x9000, scoped, tag = 'internal scratch']
  %s0 = inlined_call_operand.vmem [shape: f32[8,8], index: 0, kind: input, shape index: {}]
  %s1 = inlined_call_operand.vmem [shape: f32[64,8], index: 1, kind: input, shape index: {}]
  %s2 = inlined_call_operand.vmem [shape: f32[64,64], index: 2, kind: input, shape index: {}]
  %s3 = inlined_call_operand.vmem [shape: f32[64,1], index: 3, kind: input, shape index: {}]
  %s4 = inlined_call_operand.vmem [shape: f32[8,64], index: 4, kind: input, shape index: {}]
  %s5 = inlined_call_operand.vmem [shape: f32[8,1], index: 5, kind: input, shape index: {}]
  %s6 = inlined_call_operand.hbm [shape: f32[8,8], index: 6, kind: output, shape index: {}]
  %s7 = sld [smem:[#allocation0]]
  $region34: #{tpu_custom_call.1} parent=0
    _
  %s9 = ssub.s32 1, %s7
  %s10 = scalar_select 0, %s9, %s7
  $region1: #{tpu_custom_call.1} parent=0
    #allocation2 [shape = 'u8[4096]{0}', space=vmem, size = 0x1000, scoped, tag = 'output window, operand 0, single buffered']
    #allocation3 [shape = 's32[1]{0}', space=sflag, size = 0x4, scoped, tag = 'scoped memory for tpu_custom_call.1']
    %11 = vsyncpa [#allocation3], 0
    // Predicated region
    $region2: #{tpu_custom_call.1} parent=1 // pred_check
      _
    $region3: #{tpu_custom_call.1} parent=1 // pred_check_branch
      %13 = sbr.rel (0) target = $region5
    $region4: #{tpu_custom_call.1} parent=1 // pred_region
      _
    $region5: #{tpu_custom_call.1} parent=1 // pred_fallthru
      _
    // Predicated region
    $region6: #{tpu_custom_call.1} parent=1 // pred_check
      _
    $region7: #{tpu_custom_call.1} parent=1 // pred_check_branch
      %15 = sbr.rel (0) target = $region9
    $region8: #{tpu_custom_call.1} parent=1 // pred_region
      _
    $region9: #{tpu_custom_call.1} parent=1 // pred_fallthru
      _
    // Predicated region
    $region10: #{tpu_custom_call.1} parent=1 // pred_check
      _
    $region11: #{tpu_custom_call.1} parent=1 // pred_check_branch
      %17 = sbr.rel (0) target = $region13
    $region12: #{tpu_custom_call.1} parent=1 // pred_region
      _
    $region13: #{tpu_custom_call.1} parent=1 // pred_fallthru
      _
    // Predicated region
    $region14: #{tpu_custom_call.1} parent=1 // pred_check
      _
    $region15: #{tpu_custom_call.1} parent=1 // pred_check_branch
      %19 = sbr.rel (0) target = $region17
    $region16: #{tpu_custom_call.1} parent=1 // pred_region
      _
    $region17: #{tpu_custom_call.1} parent=1 // pred_fallthru
      _
    // Predicated region
    $region18: #{tpu_custom_call.1} parent=1 // pred_check
      _
    $region19: #{tpu_custom_call.1} parent=1 // pred_check_branch
      %21 = sbr.rel (0) target = $region21
    $region20: #{tpu_custom_call.1} parent=1 // pred_region
      _
    $region21: #{tpu_custom_call.1} parent=1 // pred_fallthru
      _
    // Predicated region
    $region22: #{tpu_custom_call.1} parent=1 // pred_check
      _
    $region23: #{tpu_custom_call.1} parent=1 // pred_check_branch
      %23 = sbr.rel (0) target = $region25
    $region24: #{tpu_custom_call.1} parent=1 // pred_region
      _
    $region25: #{tpu_custom_call.1} parent=1 // pred_fallthru
      _
    %v24 = vld [vmem:[%s0] sm:$0xff]
    %v25 = vld [vmem:[%s1] sm:$0xff]
    %v26 = vld [vmem:[%s1 + $0x8] sm:$0xff]
    %v27 = vld [vmem:[%s1 + $0x10] sm:$0xff]
    %v28 = vld [vmem:[%s1 + $0x18] sm:$0xff]
    %v29 = vld [vmem:[%s1 + $0x20] sm:$0xff]
    %v30 = vld [vmem:[%s1 + $0x28] sm:$0xff]
    %v31 = vld [vmem:[%s1 + $0x30] sm:$0xff]
    %v32 = vld [vmem:[%s1 + $0x38] sm:$0xff]
    %vm33 = vcmask 64512
    %v35 = vsel %vm33, %v25, 0
    %v38 = vsel %vm33, %v26, 0
    %v41 = vsel %vm33, %v27, 0
    %v44 = vsel %vm33, %v28, 0
    %v47 = vsel %vm33, %v29, 0
    %v50 = vsel %vm33, %v30, 0
    %v53 = vsel %vm33, %v31, 0
    %v56 = vsel %vm33, %v32, 0
    %58 = vmatpush.msra.mxu0 0.0
    %59 = vmatpush.msra.mxu0 0.0
    %60 = vmatpush.msra.mxu0 0.0
    %61 = vmatpush.msra.mxu0 0.0
    %62 = vmatpush.msra.mxu0 0.0
    %63 = vmatpush.msra.mxu0 0.0
    %64 = vmatpush.msra.mxu0 0.0
    %65 = vmatpush.msra.mxu0 0.0
    %66 = vmatpush.msra.mxu0 0.0
    %67 = vmatpush.msra.mxu0 0.0
    %68 = vmatpush.msra.mxu0 0.0
    %69 = vmatpush.msra.mxu0 0.0
    %70 = vmatpush.msra.mxu0 0.0
    %71 = vmatpush.msra.mxu0 0.0
    %72 = vmatpush.msra.mxu0 0.0
    %73 = vmatpush.msra.mxu0 %v24
    %74 = vmatmul.f32.gmra.mxu0 %v35
    %v75 = vpop.f32.mrf.mxu0
    %v76 = vadd.f32 0.0, %v75
    %77 = vmatmul.f32.gmra.mxu0 %v38
    %v78 = vpop.f32.mrf.mxu0
    %v79 = vadd.f32 0.0, %v78
    %80 = vmatmul.f32.gmra.mxu0 %v41
    %v81 = vpop.f32.mrf.mxu0
    %v82 = vadd.f32 0.0, %v81
    %83 = vmatmul.f32.gmra.mxu0 %v44
    %v84 = vpop.f32.mrf.mxu0
    %v85 = vadd.f32 0.0, %v84
    %86 = vmatmul.f32.gmra.mxu0 %v47
    %v87 = vpop.f32.mrf.mxu0
    %v88 = vadd.f32 0.0, %v87
    %89 = vmatmul.f32.gmra.mxu0 %v50
    %v90 = vpop.f32.mrf.mxu0
    %v91 = vadd.f32 0.0, %v90
    %92 = vmatmul.f32.gmra.mxu0 %v53
    %v93 = vpop.f32.mrf.mxu0
    %v94 = vadd.f32 0.0, %v93
    %95 = vmatmul.f32.gmra.mxu0 %v56
    %v96 = vpop.f32.mrf.mxu0
    %v97 = vadd.f32 0.0, %v96
    %98 = vdwg.mxu0
    %v99 = vtanh.pop %v76
    %v100 = vtanh.pop %v79
    %v101 = vtanh.pop %v82
    %v102 = vtanh.pop %v85
    %v103 = vtanh.pop %v88
    %v104 = vtanh.pop %v91
    %v105 = vtanh.pop %v94
    %v106 = vtanh.pop %v97
    %v107 = vld [vmem:[%s2] sm:$0xff]
    %v108 = vld [vmem:[%s2 + $0x8] sm:$0xff]
    %v109 = vld [vmem:[%s2 + $0x10] sm:$0xff]
    %v110 = vld [vmem:[%s2 + $0x18] sm:$0xff]
    %v111 = vld [vmem:[%s2 + $0x20] sm:$0xff]
    %v112 = vld [vmem:[%s2 + $0x28] sm:$0xff]
    %v113 = vld [vmem:[%s2 + $0x30] sm:$0xff]
    %v114 = vld [vmem:[%s2 + $0x38] sm:$0xff]
    %v115 = vld [vmem:[%s3] sm:$0xff]
    %v116 = vld [vmem:[%s3 + $0x8] sm:$0xff]
    %v117 = vld [vmem:[%s3 + $0x10] sm:$0xff]
    %v118 = vld [vmem:[%s3 + $0x18] sm:$0xff]
    %v119 = vld [vmem:[%s3 + $0x20] sm:$0xff]
    %v120 = vld [vmem:[%s3 + $0x28] sm:$0xff]
    %v121 = vld [vmem:[%s3 + $0x30] sm:$0xff]
    %v122 = vld [vmem:[%s3 + $0x38] sm:$0xff]
    %124 = vset.pattern.permute.xlu0 0
    %125 = vperm.xlu0 %124, %v115
    %v126 = vpop.permute.xlu0 %125
    %129 = vset.pattern.permute.xlu0 0
    %130 = vperm.xlu0 %129, %v116
    %v131 = vpop.permute.xlu0 %130
    %134 = vset.pattern.permute.xlu0 0
    %135 = vperm.xlu0 %134, %v117
    %v136 = vpop.permute.xlu0 %135
    %139 = vset.pattern.permute.xlu0 0
    %140 = vperm.xlu0 %139, %v118
    %v141 = vpop.permute.xlu0 %140
    %144 = vset.pattern.permute.xlu0 0
    %145 = vperm.xlu0 %144, %v119
    %v146 = vpop.permute.xlu0 %145
    %149 = vset.pattern.permute.xlu0 0
    %150 = vperm.xlu0 %149, %v120
    %v151 = vpop.permute.xlu0 %150
    %154 = vset.pattern.permute.xlu0 0
    %155 = vperm.xlu0 %154, %v121
    %v156 = vpop.permute.xlu0 %155
    %159 = vset.pattern.permute.xlu0 0
    %160 = vperm.xlu0 %159, %v122
    %v161 = vpop.permute.xlu0 %160
    %vm163 = vcmask 523264
    %v165 = vsel %vm163, %v107, 0
    %v168 = vsel %vm163, %v108, 0
    %v171 = vsel %vm163, %v109, 0
    %v174 = vsel %vm163, %v110, 0
    %v177 = vsel %vm163, %v111, 0
    %v180 = vsel %vm163, %v112, 0
    %v183 = vsel %vm163, %v113, 0
    %v186 = vsel %vm163, %v114, 0
    %188 = vmatpush.msra.mxu0 0.0
    %189 = vmatpush.msra.mxu0 0.0
    %190 = vmatpush.msra.mxu0 0.0
    %191 = vmatpush.msra.mxu0 0.0
    %192 = vmatpush.msra.mxu0 0.0
    %193 = vmatpush.msra.mxu0 0.0
    %194 = vmatpush.msra.mxu0 0.0
    %195 = vmatpush.msra.mxu0 0.0
    %196 = vmatpush.msra.mxu0 %v106
    %197 = vmatpush.msra.mxu0 %v105
    %198 = vmatpush.msra.mxu0 %v104
    %199 = vmatpush.msra.mxu0 %v103
    %200 = vmatpush.msra.mxu0 %v102
    %201 = vmatpush.msra.mxu0 %v101
    %202 = vmatpush.msra.mxu0 %v100
    %203 = vmatpush.msra.mxu0 %v99
    %204 = vmatmul.f32.gmra.mxu0 %v165
    %v205 = vpop.f32.mrf.mxu0
    %v206 = vadd.f32 %v126, %v205
    %207 = vmatmul.f32.gmra.mxu0 %v168
    %v208 = vpop.f32.mrf.mxu0
    %v209 = vadd.f32 %v131, %v208
    %210 = vmatmul.f32.gmra.mxu0 %v171
    %v211 = vpop.f32.mrf.mxu0
    %v212 = vadd.f32 %v136, %v211
    %213 = vmatmul.f32.gmra.mxu0 %v174
    %v214 = vpop.f32.mrf.mxu0
    %v215 = vadd.f32 %v141, %v214
    %216 = vmatmul.f32.gmra.mxu0 %v177
    %v217 = vpop.f32.mrf.mxu0
    %v218 = vadd.f32 %v146, %v217
    %219 = vmatmul.f32.gmra.mxu0 %v180
    %v220 = vpop.f32.mrf.mxu0
    %v221 = vadd.f32 %v151, %v220
    %222 = vmatmul.f32.gmra.mxu0 %v183
    %v223 = vpop.f32.mrf.mxu0
    %v224 = vadd.f32 %v156, %v223
    %225 = vmatmul.f32.gmra.mxu0 %v186
    %v226 = vpop.f32.mrf.mxu0
    %v227 = vadd.f32 %v161, %v226
    %228 = vdwg.mxu0
    %v229 = vtanh.pop %v206
    %v230 = vtanh.pop %v209
    %v231 = vtanh.pop %v212
    %v232 = vtanh.pop %v215
    %v233 = vtanh.pop %v218
    %v234 = vtanh.pop %v221
    %v235 = vtanh.pop %v224
    %v236 = vtanh.pop %v227
    %v237 = vld [vmem:[%s4] sm:$0xff]
    %v238 = vld [vmem:[%s5] sm:$0xff]
    %240 = vset.pattern.permute.xlu0 0
    %241 = vperm.xlu0 %240, %v238
    %v242 = vpop.permute.xlu0 %241
    %v245 = vsel %vm163, %v237, 0
    %247 = vmatpush.msra.mxu0 0.0
    %248 = vmatpush.msra.mxu0 0.0
    %249 = vmatpush.msra.mxu0 0.0
    %250 = vmatpush.msra.mxu0 0.0
    %251 = vmatpush.msra.mxu0 0.0
    %252 = vmatpush.msra.mxu0 0.0
    %253 = vmatpush.msra.mxu0 0.0
    %254 = vmatpush.msra.mxu0 0.0
    %255 = vmatpush.msra.mxu0 %v236
    %256 = vmatpush.msra.mxu0 %v235
    %257 = vmatpush.msra.mxu0 %v234
    %258 = vmatpush.msra.mxu0 %v233
    %259 = vmatpush.msra.mxu0 %v232
    %260 = vmatpush.msra.mxu0 %v231
    %261 = vmatpush.msra.mxu0 %v230
    %262 = vmatpush.msra.mxu0 %v229
    %263 = vmatmul.f32.gmra.mxu0 %v245
    %v264 = vpop.f32.mrf.mxu0
    %v265 = vadd.f32 %v242, %v264
    %266 = vdwg.mxu0
    %267 = vst.msk [vmem:[#allocation2] sm:$0xff] %vm33, %v265
    // Predicated region
    $region26: #{tpu_custom_call.1} parent=1 // pred_check
      _
    $region27: #{tpu_custom_call.1} parent=1 // pred_check_branch
      %269 = sbr.rel (0) target = $region29
    $region28: #{tpu_custom_call.1} parent=1 // pred_region
      %271 = vsyncadd [#allocation3], 0
      %s273 = sshll.u32 [#allocation2], 4
      %s274 = int_to_ptr.vmem [resolvable:$true] %s273
      %s275 = sshll.u32 %s6, 4
      %s276 = int_to_ptr.hbm [resolvable:$true] %s275
      %278 = dma.vmem_to_hbm [thread:$0]  %s274, 128, %s276, [#allocation3]
    $region29: #{tpu_custom_call.1} parent=1 // pred_fallthru
      _
    // Predicated region
    $region30: #{tpu_custom_call.1} parent=1 // pred_check
      _
    $region31: #{tpu_custom_call.1} parent=1 // pred_check_branch
      %280 = sbr.rel (0) target = $region33
    $region32: #{tpu_custom_call.1} parent=1 // pred_region
      %282 = dma.done [#allocation3], 128
    $region33: #{tpu_custom_call.1} parent=1 // pred_fallthru
      _
    %283 = vsyncpa [#allocation3], 1

</llo_original>
